<compile_context>
chip_gen: v6e
topology: v6e:2x2x1
jax: 0.10.0
libtpu: 0.0.40
codegen_flags: <defaults>
</compile_context>

<pallas_src>
import functools
import math

import jax
import jax.numpy as jnp
from jax.experimental import pallas as pl
from jax.experimental.pallas import tpu as pltpu


# ----------------------------------------------------------------------------
# small helpers
# ----------------------------------------------------------------------------

def _round_up(x, m):
    return ((x + m - 1) // m) * m


def _num_tensorcores():
    try:
        info = pltpu.get_tpu_info()
        for name in ("num_cores", "core_count", "num_tensorcores",
                     "tensor_cores_per_chip", "cores_per_chip"):
            v = getattr(info, name, None)
            if isinstance(v, int) and v > 0:
                return v
    except Exception:
        pass
    return 1                                   # conservative: v5e / v6e


def _vmem_capacity():
    try:
        return int(pltpu.get_tpu_info().vmem_capacity_bytes)
    except Exception:
        return 64 << 20                        # v7x floor


def _padded_bytes(shape, itemsize=4):
    """Bytes a block occupies once laid out in (8, 128)-tiled f32 VMEM."""
    shape = tuple(int(d) for d in shape if d is not None)
    if not shape:
        shape = (1, 1)
    if len(shape) == 1:
        shape = (1,) + shape
    lead = 1
    for d in shape[:-2]:
        lead *= d
    return lead * _round_up(shape[-2], 8) * _round_up(shape[-1], 128) * itemsize


def _vmem_limit_bytes(io_blocks, const_blocks, tmp_blocks):
    est = 2 * sum(_padded_bytes(s) for s in io_blocks)       # double-buffered tiles
    est += 2 * sum(_padded_bytes(s) for s in const_blocks)   # weights
    est += sum(_padded_bytes(s) for s in tmp_blocks)         # kernel temporaries
    phys = _vmem_capacity()
    return int(min(max(2 * est, 32 << 20), int(phys * 0.9)))


def _choose_row_tile(n, row_tile, n_cores=1):
    """Largest 8-aligned tile <= min(row_tile, n).  Only split a single-step
    grid in two when the chip actually has 2 TensorCores (v7x)."""
    if n <= 8:
        return max(int(n), 1)
    max_tile = (n // 8) * 8
    tn = min(_round_up(row_tile, 8), max_tile)
    if n_cores >= 2 and pl.cdiv(n, tn) < 2 and n >= 16:
        tn = min(_round_up(pl.cdiv(n, 2), 8), max_tile)
    return tn


def _const_spec(shape, grid_rank, single_buffer=False):
    nd = len(shape)
    if grid_rank == 1:
        idx = lambda i: (0,) * nd
    else:
        idx = lambda b, i: (0,) * nd
    if single_buffer:
        # large weights (v7x, big E): keep them single-buffered in VMEM
        return pl.BlockSpec(shape, idx, pipeline_mode=pl.Buffered(1))
    return pl.BlockSpec(shape, idx)


def _single_buffer_weights(shapes):
    return max(_padded_bytes(s) for s in shapes) >= (4 << 20)


# ----------------------------------------------------------------------------
# kernel bodies
# ----------------------------------------------------------------------------

def _pos_mlp(x, w1_ref, w2_ref, w3_ref, w4_ref, b_ref):
    """Sin -> Sin -> Sin -> Linear.  x: (tn, in_pad) f32.  alpha is folded into
    w1 and w1 is zero-row-padded so the packed operand can be used directly.
    All matmuls are f32 on the MXU (large slack); sin runs on the EUP."""
    dot = lambda a, w: jnp.dot(a, w, preferred_element_type=jnp.float32)
    h = jnp.sin(dot(x, w1_ref[...]) + b_ref[0:1, :])
    h = jnp.sin(dot(h, w2_ref[...]) + b_ref[1:2, :])
    h = jnp.sin(dot(h, w3_ref[...]) + b_ref[2:3, :])
    return dot(h, w4_ref[...]) + b_ref[3:4, :]


def _proj_tail(h0, wp2_ref, b_ref):
    """bias -> one-pass LayerNorm -> affine -> Linear(E->E).
    h0: (tn, E) = result of the Linear(C->E) matmul WITHOUT bias."""
    h = h0 + b_ref[4:5, :]
    mean = jnp.mean(h, axis=-1, keepdims=True)
    msq = jnp.mean(h * h, axis=-1, keepdims=True)
    var = msq - mean * mean
    h = (h - mean) * jax.lax.rsqrt(var + 1e-5)
    h = h * b_ref[5:6, :] + b_ref[6:7, :]
    return jnp.dot(h, wp2_ref[...], preferred_element_type=jnp.float32) + b_ref[7:8, :]


def _pos_kernel(x_ref, w1, w2, w3, w4, b, o_ref):
    """TemplateShapeEmbedding only (beta == 0 path)."""
    x = x_ref[...].astype(jnp.float32)
    o_ref[...] = _pos_mlp(x, w1, w2, w3, w4, b).astype(o_ref.dtype)


def _obj_fused_kernel(x_ref, feat_ref, w1, w2, w3, w4, wp1, wp2, b, o_ref, *,
                      img_h, img_w):
    """Fused: pos MLP + in-kernel bilinear grid_sample + proj MLP.

    x_ref block:    (tn, in_pad) = [obj_x, obj_y, template..., zero-pad]
    feat_ref block: (H*W, C_pad) feature slab for this batch element.
    The bilinear sample is a per-row 4-tap one-hot matrix (iota compares)
    multiplied against the feature slab on the MXU -- no gather."""
    xb = x_ref[...].astype(jnp.float32)
    pos = _pos_mlp(xb, w1, w2, w3, w4, b)          # obj / pad rows of w1 are zero

    # align_corners=True in a 512-pixel frame -> pixel = coord * (dim-1)/511
    gx = xb[:, 0:1] * ((img_w - 1) / 511.0)
    gy = xb[:, 1:2] * ((img_h - 1) / 511.0)
    x0 = jnp.floor(gx)
    y0 = jnp.floor(gy)
    wx = gx - x0
    wy = gy - y0
    iota = jax.lax.broadcasted_iota(jnp.int32, (xb.shape[0], img_h * img_w), 1)

    def tap(xf, yf, wgt):
        valid = (xf >= 0.0) & (xf <= img_w - 1.0) & (yf >= 0.0) & (yf <= img_h - 1.0)
        xi = jnp.clip(xf, 0.0, img_w - 1.0).astype(jnp.int32)
        yi = jnp.clip(yf, 0.0, img_h - 1.0).astype(jnp.int32)
        idx = yi * img_w + xi                                 # (tn, 1)
        w_eff = jnp.where(valid, wgt, 0.0)                    # zeros padding_mode
        return (iota == idx).astype(jnp.float32) * w_eff      # (tn, H*W)

    m = (tap(x0, y0, (1.0 - wx) * (1.0 - wy))
         + tap(x0 + 1.0, y0, wx * (1.0 - wy))
         + tap(x0, y0 + 1.0, (1.0 - wx) * wy)
         + tap(x0 + 1.0, y0 + 1.0, wx * wy))

    feat = feat_ref[...].astype(jnp.float32)                  # (H*W, C_pad)
    img = jnp.dot(m, feat, preferred_element_type=jnp.float32)        # (tn, C_pad)
    h0 = jnp.dot(img, wp1[...], preferred_element_type=jnp.float32)   # (tn, E)
    o_ref[...] = (pos + _proj_tail(h0, wp2, b)).astype(o_ref.dtype)


def _obj_presampled_kernel(x_ref, w1, w2, w3, w4, wp1, wp2, b, o_ref):
    """Fallback for large feature maps: image features sampled on the host;
    x = [template || img || zero-pad] feeds both input projections (the weight
    matrices are zero-padded so each projection sees only its columns)."""
    x = x_ref[...].astype(jnp.float32)
    pos = _pos_mlp(x, w1, w2, w3, w4, b)
    h0 = jnp.dot(x, wp1[...], preferred_element_type=jnp.float32)
    o_ref[...] = (pos + _proj_tail(h0, wp2, b)).astype(o_ref.dtype)


# ----------------------------------------------------------------------------
# host-side grid_sample (reference + large-feature-map fallback)
# ----------------------------------------------------------------------------

def _sample_image(feature, point):
    """JAX equivalent of SampleImage: bilinear grid_sample, zeros padding,
    align_corners=True, coordinates given in a 512-pixel reference frame."""
    B, C, H, W = feature.shape
    g = -1.0 + point.astype(jnp.float32) / (511.0 / 2.0)      # (B, N, 2) = (x, y)
    gx = (g[..., 0] + 1.0) * 0.5 * (W - 1)
    gy = (g[..., 1] + 1.0) * 0.5 * (H - 1)
    x0f = jnp.floor(gx)
    y0f = jnp.floor(gy)
    wx1 = gx - x0f
    wy1 = gy - y0f
    bidx = jnp.arange(B)[:, None]

    def tap(xf, yf, w):
        valid = (xf >= 0) & (xf <= W - 1) & (yf >= 0) & (yf <= H - 1)
        xc = jnp.clip(xf, 0, W - 1).astype(jnp.int32)
        yc = jnp.clip(yf, 0, H - 1).astype(jnp.int32)
        v = feature[bidx, :, yc, xc]                          # (B, N, C)
        return v * (w * valid.astype(jnp.float32))[..., None]

    return (tap(x0f,       y0f,       (1.0 - wx1) * (1.0 - wy1)) +
            tap(x0f + 1.0, y0f,       wx1 * (1.0 - wy1)) +
            tap(x0f,       y0f + 1.0, (1.0 - wx1) * wy1) +
            tap(x0f + 1.0, y0f + 1.0, wx1 * wy1))


# ----------------------------------------------------------------------------
# wrappers
# ----------------------------------------------------------------------------

def template_shape_embedding(template, prep, *, row_tile=1024,
                             out_dtype=jnp.float32):
    """TemplateShapeEmbedding forward: template (..., pos_dim) -> (..., E)."""
    w1 = prep["w1"]
    pos_dim, e = w1.shape
    lead = template.shape[:-1]
    x = template.reshape(-1, pos_dim).astype(jnp.float32)
    n = x.shape[0]

    in_pad = _round_up(pos_dim, 8)
    if in_pad != pos_dim:
        x = jnp.pad(x, ((0, 0), (0, in_pad - pos_dim)))
    w1p = jnp.zeros((in_pad, e), jnp.float32).at[:pos_dim].set(w1)

    biases4 = prep["biases"][:4]                  # (4, E): b1..b4
    consts = [w1p, prep["w2"], prep["w3"], prep["w4"], biases4]
    single = _single_buffer_weights([c.shape for c in consts])

    tn = _choose_row_tile(n, row_tile, _num_tensorcores())
    grid = (pl.cdiv(n, tn),)
    out_isz = jnp.dtype(out_dtype).itemsize
    ce = pl.CostEstimate(
        flops=int(2 * n * (in_pad * e + 3 * e * e)),
        transcendentals=int(3 * n * e),
        bytes_accessed=int(n * (in_pad * 4 + e * out_isz)
                           + sum(int(c.size) * 4 for c in consts)))

    out = pl.pallas_call(
        _pos_kernel,
        out_shape=jax.ShapeDtypeStruct((n, e), out_dtype),
        grid_spec=pltpu.PrefetchScalarGridSpec(
            num_scalar_prefetch=0,
            grid=grid,
            in_specs=[pl.BlockSpec((tn, in_pad), lambda i: (i, 0))]
                     + [_const_spec(c.shape, 1, single) for c in consts],
            out_specs=pl.BlockSpec((tn, e), lambda i: (i, 0))),
        compiler_params=pltpu.CompilerParams(
            dimension_semantics=("parallel",),
            vmem_limit_bytes=_vmem_limit_bytes(
                [(tn, in_pad), (tn, e)],
                [c.shape for c in consts],
                [(tn, e)] * 6)),
        cost_estimate=ce,
    )(x, *consts)

    return out.reshape(*lead, e)


def object_shape_embedding(obj, template, feature, beta, prep, *,
                           row_tile=1024, out_dtype=jnp.float32,
                           max_fused_hw=2048):
    """ObjectShapeEmbedding forward.

    obj: (B, N, 2) pixel coords in a 512x512 frame; template: (B, N, pos_dim);
    feature: (B, C, H, W); beta: python scalar (only gates the image branch).
    Pass out_dtype=jnp.bfloat16 to halve the output HBM write if tolerated."""
    if beta == 0:
        return template_shape_embedding(template, prep, row_tile=row_tile,
                                        out_dtype=out_dtype)

    w1 = prep["w1"]
    pos_dim, e = w1.shape
    B, C, H, W = feature.shape
    N = template.shape[-2]
    hw = H * W
    n_cores = _num_tensorcores()
    out_isz = jnp.dtype(out_dtype).itemsize

    if hw <= max_fused_hw:
        # ---- fully fused path: grid over (batch, row tiles); the bilinear ----
        # ---- grid_sample runs inside the kernel (no XLA gather).          ----
        in_dim = 2 + pos_dim
        in_pad = _round_up(in_dim, 8)
        c_pad = _round_up(C, 8)

        x = jnp.concatenate([obj.astype(jnp.float32),
                             template.astype(jnp.float32)], axis=-1)
        if in_pad != in_dim:
            x = jnp.pad(x, ((0, 0), (0, 0), (0, in_pad - in_dim)))
        feat = jnp.transpose(feature.reshape(B, C, hw), (0, 2, 1))    # (B, HW, C)
        if c_pad != C:
            feat = jnp.pad(feat, ((0, 0), (0, 0), (0, c_pad - C)))

        w1p = jnp.zeros((in_pad, e), jnp.float32).at[2:2 + pos_dim].set(w1)
        wp1p = jnp.zeros((c_pad, e), jnp.float32).at[:C].set(prep["wp1"])
        consts = [w1p, prep["w2"], prep["w3"], prep["w4"],
                  wp1p, prep["wp2"], prep["biases"]]
        single = _single_buffer_weights([c.shape for c in consts])

        tn = _choose_row_tile(N, row_tile, n_cores if B == 1 else 1)
        tn = min(tn, max(8, ((4 << 20) // (4 * hw)) // 8 * 8))   # bound one-hot temp
        grid = (B, pl.cdiv(N, tn))

        ce = pl.CostEstimate(
            flops=int(2 * B * N * (in_pad * e + 3 * e * e + hw * c_pad
                                   + c_pad * e + e * e) + 12 * B * N * e),
            transcendentals=int(3 * B * N * e),
            bytes_accessed=int(B * N * (in_pad * 4 + e * out_isz)
                               + B * hw * c_pad * feat.dtype.itemsize
                               + sum(int(c.size) * 4 for c in consts)))

        kernel = functools.partial(_obj_fused_kernel, img_h=H, img_w=W)
        out = pl.pallas_call(
            kernel,
            out_shape=jax.ShapeDtypeStruct((B, N, e), out_dtype),
            grid_spec=pltpu.PrefetchScalarGridSpec(
                num_scalar_prefetch=0,
                grid=grid,
                in_specs=[pl.BlockSpec((None, tn, in_pad), lambda b, i: (b, i, 0)),
                          pl.BlockSpec((None, hw, c_pad), lambda b, i: (b, 0, 0))]
                         + [_const_spec(c.shape, 2, single) for c in consts],
                out_specs=pl.BlockSpec((None, tn, e), lambda b, i: (b, i, 0))),
            compiler_params=pltpu.CompilerParams(
                dimension_semantics=("parallel", "parallel"),
                vmem_limit_bytes=_vmem_limit_bytes(
                    [(tn, in_pad), (hw, c_pad), (tn, e)],
                    [c.shape for c in consts],
                    [(tn, e)] * 8 + [(tn, hw)] * 2)),
            cost_estimate=ce,
        )(x, feat, *consts)
        return out

    # ---- fallback for large feature maps: sample on the host, fuse the rest ----
    # TODO(synk): for large H*W the data-dependent bilinear gather stays an XLA
    # gather; a dense one-hot matmul over H*W lanes is impractical at that size.
    img = _sample_image(feature, obj)                         # (B, N, C) f32
    lead = template.shape[:-1]
    in_dim = pos_dim + C
    in_pad = _round_up(in_dim, 8)
    x = jnp.concatenate([template.astype(jnp.float32), img],
                        axis=-1).reshape(-1, in_dim)
    if in_pad != in_dim:
        x = jnp.pad(x, ((0, 0), (0, in_pad - in_dim)))
    n = x.shape[0]

    w1p = jnp.zeros((in_pad, e), jnp.float32).at[:pos_dim].set(w1)
    wp1p = jnp.zeros((in_pad, e), jnp.float32).at[pos_dim:pos_dim + C].set(prep["wp1"])
    consts = [w1p, prep["w2"], prep["w3"], prep["w4"],
              wp1p, prep["wp2"], prep["biases"]]
    single = _single_buffer_weights([c.shape for c in consts])

    tn = _choose_row_tile(n, row_tile, n_cores)
    grid = (pl.cdiv(n, tn),)
    ce = pl.CostEstimate(
        flops=int(2 * n * (2 * in_pad * e + 4 * e * e) + 12 * n * e),
        transcendentals=int(3 * n * e),
        bytes_accessed=int(n * (in_pad * 4 + e * out_isz)
                           + sum(int(c.size) * 4 for c in consts)))

    out = pl.pallas_call(
        _obj_presampled_kernel,
        out_shape=jax.ShapeDtypeStruct((n, e), out_dtype),
        grid_spec=pltpu.PrefetchScalarGridSpec(
            num_scalar_prefetch=0,
            grid=grid,
            in_specs=[pl.BlockSpec((tn, in_pad), lambda i: (i, 0))]
                     + [_const_spec(c.shape, 1, single) for c in consts],
            out_specs=pl.BlockSpec((tn, e), lambda i: (i, 0))),
        compiler_params=pltpu.CompilerParams(
            dimension_semantics=("parallel",),
            vmem_limit_bytes=_vmem_limit_bytes(
                [(tn, in_pad), (tn, e)],
                [c.shape for c in consts],
                [(tn, e)] * 8)),
        cost_estimate=ce,
    )(x, *consts)
    return out.reshape(*lead, e)


# ----------------------------------------------------------------------------
# parameter init (mirrors the PyTorch initializers) and host-side prep
# ----------------------------------------------------------------------------

def init_object_shape_params(key, C, embed_dim, pos_dim, alpha):
    """f32 params matching the PyTorch module; weights stored as (in, out)."""
    ks = jax.random.split(key, 12)
    pi = math.pi
    u = lambda k, shape, lo, hi: jax.random.uniform(k, shape, jnp.float32, lo, hi)

    # TemplateShapeEmbedding: Sin(first) -> Sin -> Sin -> Linear
    w1 = u(ks[0], (pos_dim, embed_dim), -1.0 / pos_dim, 1.0 / pos_dim)
    b1 = u(ks[1], (embed_dim,), -pi / 2, pi / 2)
    bound = math.sqrt(6.0 / embed_dim)            # alpha = 1 for layers 2, 3
    w2 = u(ks[2], (embed_dim, embed_dim), -bound, bound)
    b2 = u(ks[3], (embed_dim,), -pi / 2, pi / 2)
    w3 = u(ks[4], (embed_dim, embed_dim), -bound, bound)
    b3 = u(ks[5], (embed_dim,), -pi / 2, pi / 2)
    lb = 1.0 / math.sqrt(embed_dim)
    w4 = u(ks[6], (embed_dim, embed_dim), -lb, lb)
    b4 = u(ks[7], (embed_dim,), -lb, lb)

    # proj: Linear(C->E) -> LayerNorm(E) -> Linear(E->E)
    lc = 1.0 / math.sqrt(C)
    wp1 = u(ks[8], (C, embed_dim), -lc, lc)
    bp1 = u(ks[9], (embed_dim,), -lc, lc)
    g_ln = jnp.ones((embed_dim,), jnp.float32)
    bt_ln = jnp.zeros((embed_dim,), jnp.float32)
    wp2 = u(ks[10], (embed_dim, embed_dim), -lb, lb)
    bp2 = u(ks[11], (embed_dim,), -lb, lb)

    return dict(pos=(w1, b1, w2, b2, w3, b3, w4, b4),
                proj=(wp1, bp1, g_ln, bt_ln, wp2, bp2))


def prepare_params(params, alpha):
    """Host-side prep: fold alpha into W1 and stack the eight per-feature
    vectors (b1..b4, bp1, ln_gamma, ln_beta, bp2) into one (8, E) operand."""
    w1, b1, w2, b2, w3, b3, w4, b4 = params["pos"]
    wp1, bp1, g_ln, bt_ln, wp2, bp2 = params["proj"]
    f32 = lambda a: a.astype(jnp.float32)
    biases = jnp.stack([b1, b2, b3, b4, bp1, g_ln, bt_ln, bp2]).astype(jnp.float32)
    return dict(w1=f32(alpha * w1), w2=f32(w2), w3=f32(w3), w4=f32(w4),
                wp1=f32(wp1), wp2=f32(wp2), biases=biases)


# ----------------------------------------------------------------------------
# pure-f32 reference (independent of kernel-side packing) for correctness
# ----------------------------------------------------------------------------

def _reference(obj, template, feature, beta, params, alpha):
    w1, b1, w2, b2, w3, b3, w4, b4 = params["pos"]
    hp = jax.lax.Precision.HIGHEST
    dot = lambda a, b: jnp.dot(a, b, precision=hp)
    x = template.astype(jnp.float32)
    h = jnp.sin(dot(alpha * x, w1) + b1)
    h = jnp.sin(dot(h, w2) + b2)
    h = jnp.sin(dot(h, w3) + b3)
    pos = dot(h, w4) + b4
    if beta == 0:
        return pos
    wp1, bp1, g_ln, bt_ln, wp2, bp2 = params["proj"]
    img = _sample_image(feature, obj)
    h = dot(img, wp1) + bp1
    mu = jnp.mean(h, axis=-1, keepdims=True)
    var = jnp.mean((h - mu) ** 2, axis=-1, keepdims=True)
    h = (h - mu) / jnp.sqrt(var + 1e-5)
    h = h * g_ln + bt_ln
    return pos + dot(h, wp2) + bp2


# ----------------------------------------------------------------------------
# demo / self-test
# ----------------------------------------------------------------------------

if __name__ == "__main__":
    key = jax.random.PRNGKey(0)
    kp, ko, kt, kf = jax.random.split(key, 4)

    batch, seq = 2, 8
    C, embed_dim, pos_dim, alpha = 4, 128, 4, 30.0   # E multiple of 128 -> lane-dense output
    H = W = 16

    params = init_object_shape_params(kp, C, embed_dim, pos_dim, alpha)
    prep = prepare_params(params, alpha)

    obj = jax.random.uniform(ko, (batch, seq, 2), jnp.float32, 0.0, 511.0)
    template = jax.random.normal(kt, (batch, seq, pos_dim), dtype=jnp.float32)
    feature = jax.random.normal(kf, (batch, C, H, W), dtype=jnp.float32)

    # beta == 0 path: positional embedding only.
    out0 = jax.block_until_ready(
        object_shape_embedding(obj, template, feature, 0.0, prep))
    ref0 = _reference(obj, template, feature, 0.0, params, alpha)
    assert out0.shape == (batch, seq, embed_dim)
    assert jnp.allclose(out0, ref0, atol=2e-2, rtol=2e-2), \
        float(jnp.max(jnp.abs(out0 - ref0)))

    # beta != 0 path: positional + fused in-kernel bilinear sample + projection.
    out1 = jax.block_until_ready(
        object_shape_embedding(obj, template, feature, 1.0, prep))
    ref1 = _reference(obj, template, feature, 1.0, params, alpha)
    assert out1.shape == (batch, seq, embed_dim)
    assert jnp.allclose(out1, ref1, atol=2e-2, rtol=2e-2), \
        float(jnp.max(jnp.abs(out1 - ref1)))

    # Larger run: 1024-row tiles, multi-step (batch, tile) grid, and a partial
    # masked last block (N = 1100 is not a multiple of the tile).
    kt2, ko2 = jax.random.split(kt)
    b2_, s2_ = 2, 1100
    obj2 = jax.random.uniform(ko2, (b2_, s2_, 2), jnp.float32, 0.0, 511.0)
    template2 = jax.random.normal(kt2, (b2_, s2_, pos_dim), dtype=jnp.float32)
    feature2 = jax.random.normal(kf, (b2_, C, H, W), dtype=jnp.float32)
    out2 = jax.block_until_ready(
        object_shape_embedding(obj2, template2, feature2, 1.0, prep))
    ref2 = _reference(obj2, template2, feature2, 1.0, params, alpha)
    assert out2.shape == (b2_, s2_, embed_dim)
    assert jnp.allclose(out2, ref2, atol=2e-2, rtol=2e-2), \
        float(jnp.max(jnp.abs(out2 - ref2)))

    print("KERNEL_OK")
</pallas_src>

<mosaic_0001>
module attributes {stable_mosaic.version = 11 : i64} {
  func.func @_pos_kernel(%arg0: i32, %arg1: memref<16x8xf32, #tpu.memory_space<vmem>>, %arg2: memref<8x128xf32, #tpu.memory_space<vmem>>, %arg3: memref<128x128xf32, #tpu.memory_space<vmem>>, %arg4: memref<128x128xf32, #tpu.memory_space<vmem>>, %arg5: memref<128x128xf32, #tpu.memory_space<vmem>>, %arg6: memref<4x128xf32, #tpu.memory_space<vmem>>, %arg7: memref<16x128xf32, #tpu.memory_space<vmem>>) attributes {dimension_semantics = [#tpu.dimension_semantics<parallel>], iteration_bounds = array<i64: 1>, scalar_prefetch = 0 : i64, scratch_operands = 0 : i64, tpu.core_type = #tpu.core_type<tc>, window_params = [{transform_indices = @transform_0, window_bounds = array<i64: 16, 8>}, {pipeline_mode = #tpu.pipeline_mode<synchronous>, transform_indices = @transform_1, window_bounds = array<i64: 8, 128>}, {pipeline_mode = #tpu.pipeline_mode<synchronous>, transform_indices = @transform_2, window_bounds = array<i64: 128, 128>}, {pipeline_mode = #tpu.pipeline_mode<synchronous>, transform_indices = @transform_3, window_bounds = array<i64: 128, 128>}, {pipeline_mode = #tpu.pipeline_mode<synchronous>, transform_indices = @transform_4, window_bounds = array<i64: 128, 128>}, {pipeline_mode = #tpu.pipeline_mode<synchronous>, transform_indices = @transform_5, window_bounds = array<i64: 4, 128>}, {transform_indices = @transform_6, window_bounds = array<i64: 16, 128>}]} {
    %c0 = arith.constant 0 : index
    %c0_0 = arith.constant 0 : index
    %0 = vector.load %arg1[%c0, %c0_0] : memref<16x8xf32, #tpu.memory_space<vmem>>, vector<16x8xf32>
    %c0_1 = arith.constant 0 : index
    %c0_2 = arith.constant 0 : index
    %1 = vector.load %arg2[%c0_1, %c0_2] : memref<8x128xf32, #tpu.memory_space<vmem>>, vector<8x128xf32>
    %cst = arith.constant dense<0.000000e+00> : vector<16x128xf32>
    %2 = tpu.matmul %0, %1, %cst {dimension_numbers = #tpu.dot_dimension_numbers<[1], [0], [0], [1], [0, 0, 1, 1], [], []>} : vector<16x8xf32>, vector<8x128xf32>, vector<16x128xf32> -> vector<16x128xf32>
    %c0_3 = arith.constant 0 : index
    %c0_4 = arith.constant 0 : index
    %3 = vector.load %arg6[%c0_3, %c0_4] : memref<4x128xf32, #tpu.memory_space<vmem>>, vector<1x128xf32>
    %4 = vector.broadcast %3 : vector<1x128xf32> to vector<16x128xf32>
    %5 = arith.addf %2, %4 : vector<16x128xf32>
    %6 = math.sin %5 : vector<16x128xf32>
    %c0_5 = arith.constant 0 : index
    %c0_6 = arith.constant 0 : index
    %7 = vector.load %arg3[%c0_5, %c0_6] : memref<128x128xf32, #tpu.memory_space<vmem>>, vector<128x128xf32>
    %cst_7 = arith.constant dense<0.000000e+00> : vector<16x128xf32>
    %8 = tpu.matmul %6, %7, %cst_7 {dimension_numbers = #tpu.dot_dimension_numbers<[1], [0], [0], [1], [0, 0, 1, 1], [], []>} : vector<16x128xf32>, vector<128x128xf32>, vector<16x128xf32> -> vector<16x128xf32>
    %c1 = arith.constant 1 : index
    %c0_8 = arith.constant 0 : index
    %9 = vector.load %arg6[%c1, %c0_8] : memref<4x128xf32, #tpu.memory_space<vmem>>, vector<1x128xf32>
    %10 = vector.broadcast %9 : vector<1x128xf32> to vector<16x128xf32>
    %11 = arith.addf %8, %10 : vector<16x128xf32>
    %12 = math.sin %11 : vector<16x128xf32>
    %c0_9 = arith.constant 0 : index
    %c0_10 = arith.constant 0 : index
    %13 = vector.load %arg4[%c0_9, %c0_10] : memref<128x128xf32, #tpu.memory_space<vmem>>, vector<128x128xf32>
    %cst_11 = arith.constant dense<0.000000e+00> : vector<16x128xf32>
    %14 = tpu.matmul %12, %13, %cst_11 {dimension_numbers = #tpu.dot_dimension_numbers<[1], [0], [0], [1], [0, 0, 1, 1], [], []>} : vector<16x128xf32>, vector<128x128xf32>, vector<16x128xf32> -> vector<16x128xf32>
    %c2 = arith.constant 2 : index
    %c0_12 = arith.constant 0 : index
    %15 = vector.load %arg6[%c2, %c0_12] : memref<4x128xf32, #tpu.memory_space<vmem>>, vector<1x128xf32>
    %16 = vector.broadcast %15 : vector<1x128xf32> to vector<16x128xf32>
    %17 = arith.addf %14, %16 : vector<16x128xf32>
    %18 = math.sin %17 : vector<16x128xf32>
    %c0_13 = arith.constant 0 : index
    %c0_14 = arith.constant 0 : index
    %19 = vector.load %arg5[%c0_13, %c0_14] : memref<128x128xf32, #tpu.memory_space<vmem>>, vector<128x128xf32>
    %cst_15 = arith.constant dense<0.000000e+00> : vector<16x128xf32>
    %20 = tpu.matmul %18, %19, %cst_15 {dimension_numbers = #tpu.dot_dimension_numbers<[1], [0], [0], [1], [0, 0, 1, 1], [], []>} : vector<16x128xf32>, vector<128x128xf32>, vector<16x128xf32> -> vector<16x128xf32>
    %c3 = arith.constant 3 : index
    %c0_16 = arith.constant 0 : index
    %21 = vector.load %arg6[%c3, %c0_16] : memref<4x128xf32, #tpu.memory_space<vmem>>, vector<1x128xf32>
    %22 = vector.broadcast %21 : vector<1x128xf32> to vector<16x128xf32>
    %23 = arith.addf %20, %22 : vector<16x128xf32>
    %c0_17 = arith.constant 0 : index
    %c0_18 = arith.constant 0 : index
    %24 = vector.load %arg7[%c0_17, %c0_18] : memref<16x128xf32, #tpu.memory_space<vmem>>, vector<16x128xf32>
    tpu.vector_store %arg7[%c0_17, %c0_18], %23 {strides = array<i32>} : memref<16x128xf32, #tpu.memory_space<vmem>>, vector<16x128xf32>,
    return
  }
  func.func @transform_0(%arg0: i32) -> (i32, i32) {
    %c0_i32 = arith.constant 0 : i32
    %c0_i32_0 = arith.constant 0 : i32
    return %arg0, %c0_i32 : i32, i32
  }
  func.func @transform_1(%arg0: i32) -> (i32, i32) {
    %c0_i32 = arith.constant 0 : i32
    %c0_i32_0 = arith.constant 0 : i32
    %c0_i32_1 = arith.constant 0 : i32
    return %c0_i32, %c0_i32_0 : i32, i32
  }
  func.func @transform_2(%arg0: i32) -> (i32, i32) {
    %c0_i32 = arith.constant 0 : i32
    %c0_i32_0 = arith.constant 0 : i32
    %c0_i32_1 = arith.constant 0 : i32
    return %c0_i32, %c0_i32_0 : i32, i32
  }
  func.func @transform_3(%arg0: i32) -> (i32, i32) {
    %c0_i32 = arith.constant 0 : i32
    %c0_i32_0 = arith.constant 0 : i32
    %c0_i32_1 = arith.constant 0 : i32
    return %c0_i32, %c0_i32_0 : i32, i32
  }
  func.func @transform_4(%arg0: i32) -> (i32, i32) {
    %c0_i32 = arith.constant 0 : i32
    %c0_i32_0 = arith.constant 0 : i32
    %c0_i32_1 = arith.constant 0 : i32
    return %c0_i32, %c0_i32_0 : i32, i32
  }
  func.func @transform_5(%arg0: i32) -> (i32, i32) {
    %c0_i32 = arith.constant 0 : i32
    %c0_i32_0 = arith.constant 0 : i32
    %c0_i32_1 = arith.constant 0 : i32
    return %c0_i32, %c0_i32_0 : i32, i32
  }
  func.func @transform_6(%arg0: i32) -> (i32, i32) {
    %c0_i32 = arith.constant 0 : i32
    %c0_i32_0 = arith.constant 0 : i32
    return %arg0, %c0_i32 : i32, i32
  }
}

</mosaic_0001>

<llo_original>
// kernel: tpu_custom_call.1
$region0: #{tpu_custom_call.1}
  #allocation0 [shape = 'u32[]', space=smem, size = 0x4, offset = 0x4, fixed_abs, tag = 'smem constant byte address 0x4 - core index']
  #allocation1 [shape = 'u32[144,128]{1,0:T(1,128)}', space=vmem, size = 0x12000, scoped, tag = 'internal scratch']
  %s0 = inlined_call_operand.vmem [shape: f32[16,8], index: 0, kind: input, shape index: {}]
  %s1 = inlined_call_operand.vmem [shape: f32[8,128], index: 1, kind: input, shape index: {}]
  %s2 = inlined_call_operand.hbm [shape: f32[128,128], index: 2, kind: input, shape index: {}]
  %s3 = inlined_call_operand.hbm [shape: f32[128,128], index: 3, kind: input, shape index: {}]
  %s4 = inlined_call_operand.hbm [shape: f32[128,128], index: 4, kind: input, shape index: {}]
  %s5 = inlined_call_operand.vmem [shape: f32[4,128], index: 5, kind: input, shape index: {}]
  %s6 = inlined_call_operand.hbm [shape: f32[16,128], index: 6, kind: output, shape index: {}]
  %s7 = sld [smem:[#allocation0]]
  $region46: #{tpu_custom_call.1} parent=0
    _
  %s9 = ssub.s32 1, %s7
  %s10 = scalar_select 0, %s9, %s7
  $region1: #{tpu_custom_call.1} parent=0
    #allocation2 [shape = 'u8[65536]{0}', space=vmem, size = 0x10000, scoped, tag = 'input window, operand 2, single buffered']
    #allocation3 [shape = 's32[1]{0}', space=sflag, size = 0x4, scoped, tag = 'scoped memory for tpu_custom_call.1']
    #allocation4 [shape = 's32[1]{0}', space=sflag, size = 0x4, scoped, tag = 'scoped memory for tpu_custom_call.1']
    #allocation5 [shape = 'u8[65536]{0}', space=vmem, size = 0x10000, scoped, tag = 'input window, operand 3, single buffered']
    #allocation6 [shape = 's32[1]{0}', space=sflag, size = 0x4, scoped, tag = 'scoped memory for tpu_custom_call.1']
    #allocation7 [shape = 'u8[65536]{0}', space=vmem, size = 0x10000, scoped, tag = 'input window, operand 4, single buffered']
    #allocation8 [shape = 'u8[8192]{0}', space=vmem, size = 0x2000, scoped, tag = 'output window, operand 0, single buffered']
    %11 = vsyncpa [#allocation3], 0
    %12 = vsyncpa [#allocation6], 0
    %13 = vsyncpa [#allocation4], 0
    // Predicated region
    $region2: #{tpu_custom_call.1} parent=1 // pred_check
      _
    $region3: #{tpu_custom_call.1} parent=1 // pred_check_branch
      %15 = sbr.rel (0) target = $region5
    $region4: #{tpu_custom_call.1} parent=1 // pred_region
      _
    $region5: #{tpu_custom_call.1} parent=1 // pred_fallthru
      _
    // Predicated region
    $region6: #{tpu_custom_call.1} parent=1 // pred_check
      _
    $region7: #{tpu_custom_call.1} parent=1 // pred_check_branch
      %17 = sbr.rel (0) target = $region9
    $region8: #{tpu_custom_call.1} parent=1 // pred_region
      _
    $region9: #{tpu_custom_call.1} parent=1 // pred_fallthru
      _
    // Predicated region
    $region10: #{tpu_custom_call.1} parent=1 // pred_check
      _
    $region11: #{tpu_custom_call.1} parent=1 // pred_check_branch
      %19 = sbr.rel (0) target = $region13
    $region12: #{tpu_custom_call.1} parent=1 // pred_region
      %s21 = ssub.s32 2048, 2048
      %22 = vsyncadd [#allocation3], %s21
      %s23 = sshll.u32 [#allocation2], 4
      %s24 = int_to_ptr.vmem [resolvable:$true] %s23
      %29 = dma.hbm_to_vmem [thread:$0]  %s2, 2048, %s24, [#allocation3], 128, 128, 8
    $region13: #{tpu_custom_call.1} parent=1 // pred_fallthru
      _
    // Predicated region
    $region14: #{tpu_custom_call.1} parent=1 // pred_check
      _
    $region15: #{tpu_custom_call.1} parent=1 // pred_check_branch
      %31 = sbr.rel (0) target = $region17
    $region16: #{tpu_custom_call.1} parent=1 // pred_region
      %s33 = ssub.s32 2048, 2048
      %34 = vsyncadd [#allocation6], %s33
      %s35 = sshll.u32 [#allocation5], 4
      %s36 = int_to_ptr.vmem [resolvable:$true] %s35
      %41 = dma.hbm_to_vmem [thread:$0]  %s3, 2048, %s36, [#allocation6], 128, 128, 8
    $region17: #{tpu_custom_call.1} parent=1 // pred_fallthru
      _
    // Predicated region
    $region18: #{tpu_custom_call.1} parent=1 // pred_check
      _
    $region19: #{tpu_custom_call.1} parent=1 // pred_check_branch
      %43 = sbr.rel (0) target = $region21
    $region20: #{tpu_custom_call.1} parent=1 // pred_region
      %s45 = ssub.s32 2048, 2048
      %46 = vsyncadd [#allocation6], %s45
      %s47 = sshll.u32 [#allocation7], 4
      %s48 = int_to_ptr.vmem [resolvable:$true] %s47
      %53 = dma.hbm_to_vmem [thread:$0]  %s4, 2048, %s48, [#allocation6], 128, 128, 8
    $region21: #{tpu_custom_call.1} parent=1 // pred_fallthru
      _
    // Predicated region
    $region22: #{tpu_custom_call.1} parent=1 // pred_check
      _
    $region23: #{tpu_custom_call.1} parent=1 // pred_check_branch
      %55 = sbr.rel (0) target = $region25
    $region24: #{tpu_custom_call.1} parent=1 // pred_region
      _
    $region25: #{tpu_custom_call.1} parent=1 // pred_fallthru
      _
    // Predicated region
    $region26: #{tpu_custom_call.1} parent=1 // pred_check
      _
    $region27: #{tpu_custom_call.1} parent=1 // pred_check_branch
      %57 = sbr.rel (0) target = $region29
    $region28: #{tpu_custom_call.1} parent=1 // pred_region
      %58 = dma.done [#allocation3], 2048
    $region29: #{tpu_custom_call.1} parent=1 // pred_fallthru
      _
    // Predicated region
    $region30: #{tpu_custom_call.1} parent=1 // pred_check
      _
    $region31: #{tpu_custom_call.1} parent=1 // pred_check_branch
      %60 = sbr.rel (0) target = $region33
    $region32: #{tpu_custom_call.1} parent=1 // pred_region
      %61 = dma.done [#allocation6], 2048
    $region33: #{tpu_custom_call.1} parent=1 // pred_fallthru
      _
    // Predicated region
    $region34: #{tpu_custom_call.1} parent=1 // pred_check
      _
    $region35: #{tpu_custom_call.1} parent=1 // pred_check_branch
      %63 = sbr.rel (0) target = $region37
    $region36: #{tpu_custom_call.1} parent=1 // pred_region
      %64 = dma.done [#allocation6], 2048
    $region37: #{tpu_custom_call.1} parent=1 // pred_fallthru
      _
    %v65 = vld [vmem:[%s0] sm:$0xff]
    %v66 = vld [vmem:[%s0 + $0x8] sm:$0xff]
    %v67 = vld [vmem:[%s1] sm:$0xff]
    %v68 = vld [vmem:[%s5] sm:$0x1]
    %v69 = vlaneseq
    %v70 = vshrl.u32 %v69, 7
    %v71 = vsub.s32 0, %v70
    %v72 = vrot.slane %v68, %v71
    %vm73 = vcmask 64512
    %v75 = vsel %vm73, %v65, 0
    %v78 = vsel %vm73, %v66, 0
    %80 = vmatprep.subr.mxu0 0.0
    %81 = vmatpush1.msra.mxu0 0.0
    %82 = vmatprep.subr.mxu0 0.0
    %83 = vmatpush1.msra.mxu0 0.0
    %84 = vmatprep.subr.mxu0 0.0
    %85 = vmatpush1.msra.mxu0 0.0
    %86 = vmatprep.subr.mxu0 0.0
    %87 = vmatpush1.msra.mxu0 0.0
    %88 = vmatprep.subr.mxu0 0.0
    %89 = vmatpush1.msra.mxu0 0.0
    %90 = vmatprep.subr.mxu0 0.0
    %91 = vmatpush1.msra.mxu0 0.0
    %92 = vmatprep.subr.mxu0 0.0
    %93 = vmatpush1.msra.mxu0 0.0
    %94 = vmatprep.subr.mxu0 0.0
    %95 = vmatpush1.msra.mxu0 0.0
    %96 = vmatprep.subr.mxu0 0.0
    %97 = vmatpush1.msra.mxu0 0.0
    %98 = vmatprep.subr.mxu0 0.0
    %99 = vmatpush1.msra.mxu0 0.0
    %100 = vmatprep.subr.mxu0 0.0
    %101 = vmatpush1.msra.mxu0 0.0
    %102 = vmatprep.subr.mxu0 0.0
    %103 = vmatpush1.msra.mxu0 0.0
    %104 = vmatprep.subr.mxu0 0.0
    %105 = vmatpush1.msra.mxu0 0.0
    %106 = vmatprep.subr.mxu0 0.0
    %107 = vmatpush1.msra.mxu0 0.0
    %108 = vmatprep.subr.mxu0 0.0
    %109 = vmatpush1.msra.mxu0 0.0
    %110 = vmatprep.subr.mxu0 0.0
    %111 = vmatpush1.msra.mxu0 %v67
    %112 = vmatprep.subr.mxu0 0.0
    %113 = vmatpush2.msra.mxu0 0.0
    %114 = vmatprep.subr.mxu0 0.0
    %115 = vmatpush2.msra.mxu0 0.0
    %116 = vmatprep.subr.mxu0 0.0
    %117 = vmatpush2.msra.mxu0 0.0
    %118 = vmatprep.subr.mxu0 0.0
    %119 = vmatpush2.msra.mxu0 0.0
    %120 = vmatprep.subr.mxu0 0.0
    %121 = vmatpush2.msra.mxu0 0.0
    %122 = vmatprep.subr.mxu0 0.0
    %123 = vmatpush2.msra.mxu0 0.0
    %124 = vmatprep.subr.mxu0 0.0
    %125 = vmatpush2.msra.mxu0 0.0
    %126 = vmatprep.subr.mxu0 0.0
    %127 = vmatpush2.msra.mxu0 0.0
    %128 = vmatprep.subr.mxu0 0.0
    %129 = vmatpush2.msra.mxu0 0.0
    %130 = vmatprep.subr.mxu0 0.0
    %131 = vmatpush2.msra.mxu0 0.0
    %132 = vmatprep.subr.mxu0 0.0
    %133 = vmatpush2.msra.mxu0 0.0
    %134 = vmatprep.subr.mxu0 0.0
    %135 = vmatpush2.msra.mxu0 0.0
    %136 = vmatprep.subr.mxu0 0.0
    %137 = vmatpush2.msra.mxu0 0.0
    %138 = vmatprep.subr.mxu0 0.0
    %139 = vmatpush2.msra.mxu0 0.0
    %140 = vmatprep.subr.mxu0 0.0
    %141 = vmatpush2.msra.mxu0 0.0
    %142 = vmatprep.subr.mxu0 0.0
    %143 = vmatpush2.msra.mxu0 0.0
    %144 = vmatprep.mubr.f32.mxu0 0.0
    %145 = vmatmul.mubr.f32.gmra.mxu0 %v75
    %v146 = vpop.f32.mrf.mxu0
    %v147 = vadd.f32 %v72, %v146
    %v148 = vpop.f32.mrf.mxu0
    %149 = vmatprep.mubr.f32.mxu0 0.0
    %150 = vmatmul.mubr.f32.gmra.mxu0 %v78
    %v151 = vpop.f32.mrf.mxu0
    %v152 = vadd.f32 %v72, %v151
    %v153 = vpop.f32.mrf.mxu0
    %154 = vdwg.mxu0
    %v155 = vand.u32 2147483647, %v147
    %vm156 = vcmp.le.f32.partialorder %v155, 0.7853982
    %vm157 = vcmp.lt.s32.totalorder %v147, 0
    %v158 = vand.u32 %v147, 2139095040
    %v159 = vshrl.u32 %v158, 23
    %v160 = vsub.s32 %v159, 127
    %v161 = vand.u32 2147483647, %v147
    %v162 = vand.u32 %v161, 8388607
    %v163 = vor.u32 %v162, 8388608
    %v164 = vsub.s32 0, %v163
    %v165 = vadd.s32 %v160, 1
    %vm166 = vcmp.gt.s32.totalorder %v165, 0
    %v167 = vsel %vm166, %v165, 0
    %v168 = vshrl.u32 %v167, 5
    %v169 = vand.u32 %v167, 31
    %v170 = vsub.s32 32, %v169
    %v171 = vshrl.u32 683565275, %v170
    %v172 = vshll.u32 683565275, %v169
    %v173 = vshrl.u32 2475754826, %v170
    %v174 = vor.u32 %v172, %v173
    %v175 = vshll.u32 2475754826, %v169
    %v176 = vshrl.u32 2131351028, %v170
    %v177 = vor.u32 %v175, %v176
    %v178 = vshll.u32 2131351028, %v169
    %v179 = vshrl.u32 2102212464, %v170
    %v180 = vor.u32 %v178, %v179
    %v181 = vshll.u32 2102212464, %v169
    %v182 = vshrl.u32 920167782, %v170
    %v183 = vor.u32 %v181, %v182
    %v184 = vshll.u32 920167782, %v169
    %v185 = vshrl.u32 1326507024, %v170
    %v186 = vor.u32 %v184, %v185
    %vm187 = vcmp.lt.s32.totalorder %v168, 1
    %vm188 = vcmp.lt.s32.totalorder %v168, 2
    %vm189 = vcmp.lt.s32.totalorder %v168, 3
    %vm190 = vcmp.lt.s32.totalorder %v168, 4
    %v191 = vsel %vm187, %v171, %v174
    %v192 = vsel %vm190, %v180, 2102212464
    %v193 = vsel %vm189, %v177, %v192
    %v194 = vsel %vm188, %v191, %v193
    %v195 = vsel %vm187, %v174, %v177
    %v196 = vsel %vm190, %v183, 920167782
    %v197 = vsel %vm189, %v180, %v196
    %v198 = vsel %vm188, %v195, %v197
    %v199 = vsel %vm187, %v177, %v180
    %v200 = vsel %vm190, %v186, 1326507024
    %v201 = vsel %vm189, %v183, %v200
    %v202 = vsel %vm188, %v199, %v201
    %v203 = vshll.u32 %v163, 8
    %v204 = vmul.u32.u64.compose %v203, %v202
    %v205 = vextract.low.u32 %v204
    %v206 = vextract.high.u32 %v204
    %v207 = vmul.u32.u64.compose %v203, %v198
    %v208 = vextract.low.u32 %v207
    %v209 = vextract.high.u32 %v207
    %v210 = vmul.u32 %v203, %v194
    %v211 = vadd.s32 %v206, %v208
    %vm212 = vc.u32 %v206, %v208
    %v213 = vadd.s32 %v209, 1
    %v214 = vsel %vm212, %v213, %v209
    %v215 = vadd.s32 %v210, %v214
    %v216 = vadd.s32 %v215, 536870912
    %v217 = vshrl.u32 %v216, 30
    %v218 = vshll.u32 %v217, 30
    %v219 = vsub.s32 %v215, %v218
    %vm220 = vcmp.lt.s32.totalorder %v219, 0
    %v221 = vsub.s32 0, %v219
    %v222 = vsel %vm220, %v221, %v219
    %v223 = vclz %v222
    %v224 = vsub.s32 %v223, 2
    %vm225 = vcmp.gt.s32.totalorder 0, %v224
    %v226 = vsel %vm225, 0, %v224
    %v227 = vsub.s32 32, %v226
    %v228 = vshll.u32 %v219, %v226
    %v229 = vshrl.u32 %v211, %v227
    %v230 = vor.u32 %v228, %v229
    %v231 = vsub.s32 4294967266, %v226
    %v232 = vadd.s32 %v231, 127
    %v233 = vshll.u32 %v232, 23
    %v234 = vor.u32 4788187, %v233
    %v235 = vand.u32 2147483647, %v234
    %v237 = vcvt.s32.f32 %v230
    %v238 = vmul.f32 %v237, %v235
    %v239 = vxor.u32 %v238, 2147483648
    %v240 = vsel %vm157, %v239, %v238
    %v241 = vsub.s32 4, %v217
    %v242 = vsel %vm157, %v241, %v217
    %v243 = vsel %vm156, %v147, %v240
    %v244 = vsel %vm156, 0, %v242
    %v245 = vcosq.f32.pop %v243
    %v246 = vsinq.f32.pop %v243
    %vm247 = vweird.f32 %v147
    %v248 = vadd.s32 %v244, 3
    %v249 = vand.u32 %v248, 3
    %vm250 = vcmp.lt.s32.totalorder %v249, 2
    %vm251 = vcmp.eq.s32.totalorder %v249, 0
    %v252 = vxor.u32 %v246, 2147483648
    %v253 = vsel %vm251, %v245, %v252
    %vm254 = vcmp.eq.s32.totalorder %v249, 2
    %v255 = vxor.u32 %v245, 2147483648
    %v256 = vsel %vm254, %v255, %v246
    %v257 = vsel %vm250, %v253, %v256
    %v258 = vsel %vm247, nan, %v257
    %v259 = vand.u32 2147483647, %v152
    %vm260 = vcmp.le.f32.partialorder %v259, 0.7853982
    %vm261 = vcmp.lt.s32.totalorder %v152, 0
    %v262 = vand.u32 %v152, 2139095040
    %v263 = vshrl.u32 %v262, 23
    %v264 = vsub.s32 %v263, 127
    %v265 = vand.u32 2147483647, %v152
    %v266 = vand.u32 %v265, 8388607
    %v267 = vor.u32 %v266, 8388608
    %v268 = vsub.s32 0, %v267
    %v269 = vadd.s32 %v264, 1
    %vm270 = vcmp.gt.s32.totalorder %v269, 0
    %v271 = vsel %vm270, %v269, 0
    %v272 = vshrl.u32 %v271, 5
    %v273 = vand.u32 %v271, 31
    %v274 = vsub.s32 32, %v273
    %v275 = vshrl.u32 683565275, %v274
    %v276 = vshll.u32 683565275, %v273
    %v277 = vshrl.u32 2475754826, %v274
    %v278 = vor.u32 %v276, %v277
    %v279 = vshll.u32 2475754826, %v273
    %v280 = vshrl.u32 2131351028, %v274
    %v281 = vor.u32 %v279, %v280
    %v282 = vshll.u32 2131351028, %v273
    %v283 = vshrl.u32 2102212464, %v274
    %v284 = vor.u32 %v282, %v283
    %v285 = vshll.u32 2102212464, %v273
    %v286 = vshrl.u32 920167782, %v274
    %v287 = vor.u32 %v285, %v286
    %v288 = vshll.u32 920167782, %v273
    %v289 = vshrl.u32 1326507024, %v274
    %v290 = vor.u32 %v288, %v289
    %vm291 = vcmp.lt.s32.totalorder %v272, 1
    %vm292 = vcmp.lt.s32.totalorder %v272, 2
    %vm293 = vcmp.lt.s32.totalorder %v272, 3
    %vm294 = vcmp.lt.s32.totalorder %v272, 4
    %v295 = vsel %vm291, %v275, %v278
    %v296 = vsel %vm294, %v284, 2102212464
    %v297 = vsel %vm293, %v281, %v296
    %v298 = vsel %vm292, %v295, %v297
    %v299 = vsel %vm291, %v278, %v281
    %v300 = vsel %vm294, %v287, 920167782
    %v301 = vsel %vm293, %v284, %v300
    %v302 = vsel %vm292, %v299, %v301
    %v303 = vsel %vm291, %v281, %v284
    %v304 = vsel %vm294, %v290, 1326507024
    %v305 = vsel %vm293, %v287, %v304
    %v306 = vsel %vm292, %v303, %v305
    %v307 = vshll.u32 %v267, 8
    %v308 = vmul.u32.u64.compose %v307, %v306
    %v309 = vextract.low.u32 %v308
    %v310 = vextract.high.u32 %v308
    %v311 = vmul.u32.u64.compose %v307, %v302
    %v312 = vextract.low.u32 %v311
    %v313 = vextract.high.u32 %v311
    %v314 = vmul.u32 %v307, %v298
    %v315 = vadd.s32 %v310, %v312
    %vm316 = vc.u32 %v310, %v312
    %v317 = vadd.s32 %v313, 1
    %v318 = vsel %vm316, %v317, %v313
    %v319 = vadd.s32 %v314, %v318
    %v320 = vadd.s32 %v319, 536870912
    %v321 = vshrl.u32 %v320, 30
    %v322 = vshll.u32 %v321, 30
    %v323 = vsub.s32 %v319, %v322
    %vm324 = vcmp.lt.s32.totalorder %v323, 0
    %v325 = vsub.s32 0, %v323
    %v326 = vsel %vm324, %v325, %v323
    %v327 = vclz %v326
    %v328 = vsub.s32 %v327, 2
    %vm329 = vcmp.gt.s32.totalorder 0, %v328
    %v330 = vsel %vm329, 0, %v328
    %v331 = vsub.s32 32, %v330
    %v332 = vshll.u32 %v323, %v330
    %v333 = vshrl.u32 %v315, %v331
    %v334 = vor.u32 %v332, %v333
    %v335 = vsub.s32 4294967266, %v330
    %v336 = vadd.s32 %v335, 127
    %v337 = vshll.u32 %v336, 23
    %v338 = vor.u32 4788187, %v337
    %v339 = vand.u32 2147483647, %v338
    %v341 = vcvt.s32.f32 %v334
    %v342 = vmul.f32 %v341, %v339
    %v343 = vxor.u32 %v342, 2147483648
    %v344 = vsel %vm261, %v343, %v342
    %v345 = vsub.s32 4, %v321
    %v346 = vsel %vm261, %v345, %v321
    %v347 = vsel %vm260, %v152, %v344
    %v348 = vsel %vm260, 0, %v346
    %v349 = vcosq.f32.pop %v347
    %v350 = vsinq.f32.pop %v347
    %vm351 = vweird.f32 %v152
    %v352 = vadd.s32 %v348, 3
    %v353 = vand.u32 %v352, 3
    %vm354 = vcmp.lt.s32.totalorder %v353, 2
    %vm355 = vcmp.eq.s32.totalorder %v353, 0
    %v356 = vxor.u32 %v350, 2147483648
    %v357 = vsel %vm355, %v349, %v356
    %vm358 = vcmp.eq.s32.totalorder %v353, 2
    %v359 = vxor.u32 %v349, 2147483648
    %v360 = vsel %vm358, %v359, %v350
    %v361 = vsel %vm354, %v357, %v360
    %v362 = vsel %vm351, nan, %v361
    %v363 = vld [vmem:[#allocation2] sm:$0xff]
    %v364 = vld [vmem:[#allocation2 + $0x8] sm:$0xff]
    %v365 = vld [vmem:[#allocation2 + $0x10] sm:$0xff]
    %v366 = vld [vmem:[#allocation2 + $0x18] sm:$0xff]
    %v367 = vld [vmem:[#allocation2 + $0x20] sm:$0xff]
    %v368 = vld [vmem:[#allocation2 + $0x28] sm:$0xff]
    %v369 = vld [vmem:[#allocation2 + $0x30] sm:$0xff]
    %v370 = vld [vmem:[#allocation2 + $0x38] sm:$0xff]
    %v371 = vld [vmem:[#allocation2 + $0x40] sm:$0xff]
    %v372 = vld [vmem:[#allocation2 + $0x48] sm:$0xff]
    %v373 = vld [vmem:[#allocation2 + $0x50] sm:$0xff]
    %v374 = vld [vmem:[#allocation2 + $0x58] sm:$0xff]
    %v375 = vld [vmem:[#allocation2 + $0x60] sm:$0xff]
    %v376 = vld [vmem:[#allocation2 + $0x68] sm:$0xff]
    %v377 = vld [vmem:[#allocation2 + $0x70] sm:$0xff]
    %v378 = vld [vmem:[#allocation2 + $0x78] sm:$0xff]
    %v379 = vld [vmem:[%s5 + $0x1] sm:$0x1]
    %v380 = vlaneseq
    %v381 = vshrl.u32 %v380, 7
    %v382 = vsub.s32 0, %v381
    %v383 = vrot.slane %v379, %v382
    %384 = vmatprep.subr.mxu0 0.0
    %385 = vmatpush1.msra.mxu0 %v378
    %386 = vmatprep.subr.mxu0 0.0
    %387 = vmatpush1.msra.mxu0 %v377
    %388 = vmatprep.subr.mxu0 0.0
    %389 = vmatpush1.msra.mxu0 %v376
    %390 = vmatprep.subr.mxu0 0.0
    %391 = vmatpush1.msra.mxu0 %v375
    %392 = vmatprep.subr.mxu0 0.0
    %393 = vmatpush1.msra.mxu0 %v374
    %394 = vmatprep.subr.mxu0 0.0
    %395 = vmatpush1.msra.mxu0 %v373
    %396 = vmatprep.subr.mxu0 0.0
    %397 = vmatpush1.msra.mxu0 %v372
    %398 = vmatprep.subr.mxu0 0.0
    %399 = vmatpush1.msra.mxu0 %v371
    %400 = vmatprep.subr.mxu0 0.0
    %401 = vmatpush1.msra.mxu0 %v370
    %402 = vmatprep.subr.mxu0 0.0
    %403 = vmatpush1.msra.mxu0 %v369
    %404 = vmatprep.subr.mxu0 0.0
    %405 = vmatpush1.msra.mxu0 %v368
    %406 = vmatprep.subr.mxu0 0.0
    %407 = vmatpush1.msra.mxu0 %v367
    %408 = vmatprep.subr.mxu0 0.0
    %409 = vmatpush1.msra.mxu0 %v366
    %410 = vmatprep.subr.mxu0 0.0
    %411 = vmatpush1.msra.mxu0 %v365
    %412 = vmatprep.subr.mxu0 0.0
    %413 = vmatpush1.msra.mxu0 %v364
    %414 = vmatprep.subr.mxu0 0.0
    %415 = vmatpush1.msra.mxu0 %v363
    %416 = vmatprep.subr.mxu0 0.0
    %417 = vmatpush2.msra.mxu0 0.0
    %418 = vmatprep.subr.mxu0 0.0
    %419 = vmatpush2.msra.mxu0 0.0
    %420 = vmatprep.subr.mxu0 0.0
    %421 = vmatpush2.msra.mxu0 0.0
    %422 = vmatprep.subr.mxu0 0.0
    %423 = vmatpush2.msra.mxu0 0.0
    %424 = vmatprep.subr.mxu0 0.0
    %425 = vmatpush2.msra.mxu0 0.0
    %426 = vmatprep.subr.mxu0 0.0
    %427 = vmatpush2.msra.mxu0 0.0
    %428 = vmatprep.subr.mxu0 0.0
    %429 = vmatpush2.msra.mxu0 0.0
    %430 = vmatprep.subr.mxu0 0.0
    %431 = vmatpush2.msra.mxu0 0.0
    %432 = vmatprep.subr.mxu0 0.0
    %433 = vmatpush2.msra.mxu0 0.0
    %434 = vmatprep.subr.mxu0 0.0
    %435 = vmatpush2.msra.mxu0 0.0
    %436 = vmatprep.subr.mxu0 0.0
    %437 = vmatpush2.msra.mxu0 0.0
    %438 = vmatprep.subr.mxu0 0.0
    %439 = vmatpush2.msra.mxu0 0.0
    %440 = vmatprep.subr.mxu0 0.0
    %441 = vmatpush2.msra.mxu0 0.0
    %442 = vmatprep.subr.mxu0 0.0
    %443 = vmatpush2.msra.mxu0 0.0
    %444 = vmatprep.subr.mxu0 0.0
    %445 = vmatpush2.msra.mxu0 0.0
    %446 = vmatprep.subr.mxu0 0.0
    %447 = vmatpush2.msra.mxu0 0.0
    %448 = vmatprep.mubr.f32.mxu0 0.0
    %449 = vmatmul.mubr.f32.gmra.mxu0 %v258
    %v450 = vpop.f32.mrf.mxu0
    %v451 = vadd.f32 %v383, %v450
    %v452 = vpop.f32.mrf.mxu0
    %453 = vmatprep.mubr.f32.mxu0 0.0
    %454 = vmatmul.mubr.f32.gmra.mxu0 %v362
    %v455 = vpop.f32.mrf.mxu0
    %v456 = vadd.f32 %v383, %v455
    %v457 = vpop.f32.mrf.mxu0
    %458 = vdwg.mxu0
    %v459 = vand.u32 2147483647, %v451
    %vm460 = vcmp.le.f32.partialorder %v459, 0.7853982
    %vm461 = vcmp.lt.s32.totalorder %v451, 0
    %v462 = vand.u32 %v451, 2139095040
    %v463 = vshrl.u32 %v462, 23
    %v464 = vsub.s32 %v463, 127
    %v465 = vand.u32 2147483647, %v451
    %v466 = vand.u32 %v465, 8388607
    %v467 = vor.u32 %v466, 8388608
    %v468 = vsub.s32 0, %v467
    %v469 = vadd.s32 %v464, 1
    %vm470 = vcmp.gt.s32.totalorder %v469, 0
    %v471 = vsel %vm470, %v469, 0
    %v472 = vshrl.u32 %v471, 5
    %v473 = vand.u32 %v471, 31
    %v474 = vsub.s32 32, %v473
    %v475 = vshrl.u32 683565275, %v474
    %v476 = vshll.u32 683565275, %v473
    %v477 = vshrl.u32 2475754826, %v474
    %v478 = vor.u32 %v476, %v477
    %v479 = vshll.u32 2475754826, %v473
    %v480 = vshrl.u32 2131351028, %v474
    %v481 = vor.u32 %v479, %v480
    %v482 = vshll.u32 2131351028, %v473
    %v483 = vshrl.u32 2102212464, %v474
    %v484 = vor.u32 %v482, %v483
    %v485 = vshll.u32 2102212464, %v473
    %v486 = vshrl.u32 920167782, %v474
    %v487 = vor.u32 %v485, %v486
    %v488 = vshll.u32 920167782, %v473
    %v489 = vshrl.u32 1326507024, %v474
    %v490 = vor.u32 %v488, %v489
    %vm491 = vcmp.lt.s32.totalorder %v472, 1
    %vm492 = vcmp.lt.s32.totalorder %v472, 2
    %vm493 = vcmp.lt.s32.totalorder %v472, 3
    %vm494 = vcmp.lt.s32.totalorder %v472, 4
    %v495 = vsel %vm491, %v475, %v478
    %v496 = vsel %vm494, %v484, 2102212464
    %v497 = vsel %vm493, %v481, %v496
    %v498 = vsel %vm492, %v495, %v497
    %v499 = vsel %vm491, %v478, %v481
    %v500 = vsel %vm494, %v487, 920167782
    %v501 = vsel %vm493, %v484, %v500
    %v502 = vsel %vm492, %v499, %v501
    %v503 = vsel %vm491, %v481, %v484
    %v504 = vsel %vm494, %v490, 1326507024
    %v505 = vsel %vm493, %v487, %v504
    %v506 = vsel %vm492, %v503, %v505
    %v507 = vshll.u32 %v467, 8
    %v508 = vmul.u32.u64.compose %v507, %v506
    %v509 = vextract.low.u32 %v508
    %v510 = vextract.high.u32 %v508
    %v511 = vmul.u32.u64.compose %v507, %v502
    %v512 = vextract.low.u32 %v511
    %v513 = vextract.high.u32 %v511
    %v514 = vmul.u32 %v507, %v498
    %v515 = vadd.s32 %v510, %v512
    %vm516 = vc.u32 %v510, %v512
    %v517 = vadd.s32 %v513, 1
    %v518 = vsel %vm516, %v517, %v513
    %v519 = vadd.s32 %v514, %v518
    %v520 = vadd.s32 %v519, 536870912
    %v521 = vshrl.u32 %v520, 30
    %v522 = vshll.u32 %v521, 30
    %v523 = vsub.s32 %v519, %v522
    %vm524 = vcmp.lt.s32.totalorder %v523, 0
    %v525 = vsub.s32 0, %v523
    %v526 = vsel %vm524, %v525, %v523
    %v527 = vclz %v526
    %v528 = vsub.s32 %v527, 2
    %vm529 = vcmp.gt.s32.totalorder 0, %v528
    %v530 = vsel %vm529, 0, %v528
    %v531 = vsub.s32 32, %v530
    %v532 = vshll.u32 %v523, %v530
    %v533 = vshrl.u32 %v515, %v531
    %v534 = vor.u32 %v532, %v533
    %v535 = vsub.s32 4294967266, %v530
    %v536 = vadd.s32 %v535, 127
    %v537 = vshll.u32 %v536, 23
    %v538 = vor.u32 4788187, %v537
    %v539 = vand.u32 2147483647, %v538
    %v541 = vcvt.s32.f32 %v534
    %v542 = vmul.f32 %v541, %v539
    %v543 = vxor.u32 %v542, 2147483648
    %v544 = vsel %vm461, %v543, %v542
    %v545 = vsub.s32 4, %v521
    %v546 = vsel %vm461, %v545, %v521
    %v547 = vsel %vm460, %v451, %v544
    %v548 = vsel %vm460, 0, %v546
    %v549 = vcosq.f32.pop %v547
    %v550 = vsinq.f32.pop %v547
    %vm551 = vweird.f32 %v451
    %v552 = vadd.s32 %v548, 3
    %v553 = vand.u32 %v552, 3
    %vm554 = vcmp.lt.s32.totalorder %v553, 2
    %vm555 = vcmp.eq.s32.totalorder %v553, 0
    %v556 = vxor.u32 %v550, 2147483648
    %v557 = vsel %vm555, %v549, %v556
    %vm558 = vcmp.eq.s32.totalorder %v553, 2
    %v559 = vxor.u32 %v549, 2147483648
    %v560 = vsel %vm558, %v559, %v550
    %v561 = vsel %vm554, %v557, %v560
    %v562 = vsel %vm551, nan, %v561
    %v563 = vand.u32 2147483647, %v456
    %vm564 = vcmp.le.f32.partialorder %v563, 0.7853982
    %vm565 = vcmp.lt.s32.totalorder %v456, 0
    %v566 = vand.u32 %v456, 2139095040
    %v567 = vshrl.u32 %v566, 23
    %v568 = vsub.s32 %v567, 127
    %v569 = vand.u32 2147483647, %v456
    %v570 = vand.u32 %v569, 8388607
    %v571 = vor.u32 %v570, 8388608
    %v572 = vsub.s32 0, %v571
    %v573 = vadd.s32 %v568, 1
    %vm574 = vcmp.gt.s32.totalorder %v573, 0
    %v575 = vsel %vm574, %v573, 0
    %v576 = vshrl.u32 %v575, 5
    %v577 = vand.u32 %v575, 31
    %v578 = vsub.s32 32, %v577
    %v579 = vshrl.u32 683565275, %v578
    %v580 = vshll.u32 683565275, %v577
    %v581 = vshrl.u32 2475754826, %v578
    %v582 = vor.u32 %v580, %v581
    %v583 = vshll.u32 2475754826, %v577
    %v584 = vshrl.u32 2131351028, %v578
    %v585 = vor.u32 %v583, %v584
    %v586 = vshll.u32 2131351028, %v577
    %v587 = vshrl.u32 2102212464, %v578
    %v588 = vor.u32 %v586, %v587
    %v589 = vshll.u32 2102212464, %v577
    %v590 = vshrl.u32 920167782, %v578
    %v591 = vor.u32 %v589, %v590
    %v592 = vshll.u32 920167782, %v577
    %v593 = vshrl.u32 1326507024, %v578
    %v594 = vor.u32 %v592, %v593
    %vm595 = vcmp.lt.s32.totalorder %v576, 1
    %vm596 = vcmp.lt.s32.totalorder %v576, 2
    %vm597 = vcmp.lt.s32.totalorder %v576, 3
    %vm598 = vcmp.lt.s32.totalorder %v576, 4
    %v599 = vsel %vm595, %v579, %v582
    %v600 = vsel %vm598, %v588, 2102212464
    %v601 = vsel %vm597, %v585, %v600
    %v602 = vsel %vm596, %v599, %v601
    %v603 = vsel %vm595, %v582, %v585
    %v604 = vsel %vm598, %v591, 920167782
    %v605 = vsel %vm597, %v588, %v604
    %v606 = vsel %vm596, %v603, %v605
    %v607 = vsel %vm595, %v585, %v588
    %v608 = vsel %vm598, %v594, 1326507024
    %v609 = vsel %vm597, %v591, %v608
    %v610 = vsel %vm596, %v607, %v609
    %v611 = vshll.u32 %v571, 8
    %v612 = vmul.u32.u64.compose %v611, %v610
    %v613 = vextract.low.u32 %v612
    %v614 = vextract.high.u32 %v612
    %v615 = vmul.u32.u64.compose %v611, %v606
    %v616 = vextract.low.u32 %v615
    %v617 = vextract.high.u32 %v615
    %v618 = vmul.u32 %v611, %v602
    %v619 = vadd.s32 %v614, %v616
    %vm620 = vc.u32 %v614, %v616
    %v621 = vadd.s32 %v617, 1
    %v622 = vsel %vm620, %v621, %v617
    %v623 = vadd.s32 %v618, %v622
    %v624 = vadd.s32 %v623, 536870912
    %v625 = vshrl.u32 %v624, 30
    %v626 = vshll.u32 %v625, 30
    %v627 = vsub.s32 %v623, %v626
    %vm628 = vcmp.lt.s32.totalorder %v627, 0
    %v629 = vsub.s32 0, %v627
    %v630 = vsel %vm628, %v629, %v627
    %v631 = vclz %v630
    %v632 = vsub.s32 %v631, 2
    %vm633 = vcmp.gt.s32.totalorder 0, %v632
    %v634 = vsel %vm633, 0, %v632
    %v635 = vsub.s32 32, %v634
    %v636 = vshll.u32 %v627, %v634
    %v637 = vshrl.u32 %v619, %v635
    %v638 = vor.u32 %v636, %v637
    %v639 = vsub.s32 4294967266, %v634
    %v640 = vadd.s32 %v639, 127
    %v641 = vshll.u32 %v640, 23
    %v642 = vor.u32 4788187, %v641
    %v643 = vand.u32 2147483647, %v642
    %v645 = vcvt.s32.f32 %v638
    %v646 = vmul.f32 %v645, %v643
    %v647 = vxor.u32 %v646, 2147483648
    %v648 = vsel %vm565, %v647, %v646
    %v649 = vsub.s32 4, %v625
    %v650 = vsel %vm565, %v649, %v625
    %v651 = vsel %vm564, %v456, %v648
    %v652 = vsel %vm564, 0, %v650
    %v653 = vcosq.f32.pop %v651
    %v654 = vsinq.f32.pop %v651
    %vm655 = vweird.f32 %v456
    %v656 = vadd.s32 %v652, 3
    %v657 = vand.u32 %v656, 3
    %vm658 = vcmp.lt.s32.totalorder %v657, 2
    %vm659 = vcmp.eq.s32.totalorder %v657, 0
    %v660 = vxor.u32 %v654, 2147483648
    %v661 = vsel %vm659, %v653, %v660
    %vm662 = vcmp.eq.s32.totalorder %v657, 2
    %v663 = vxor.u32 %v653, 2147483648
    %v664 = vsel %vm662, %v663, %v654
    %v665 = vsel %vm658, %v661, %v664
    %v666 = vsel %vm655, nan, %v665
    %v667 = vld [vmem:[#allocation5] sm:$0xff]
    %v668 = vld [vmem:[#allocation5 + $0x8] sm:$0xff]
    %v669 = vld [vmem:[#allocation5 + $0x10] sm:$0xff]
    %v670 = vld [vmem:[#allocation5 + $0x18] sm:$0xff]
    %v671 = vld [vmem:[#allocation5 + $0x20] sm:$0xff]
    %v672 = vld [vmem:[#allocation5 + $0x28] sm:$0xff]
    %v673 = vld [vmem:[#allocation5 + $0x30] sm:$0xff]
    %v674 = vld [vmem:[#allocation5 + $0x38] sm:$0xff]
    %v675 = vld [vmem:[#allocation5 + $0x40] sm:$0xff]
    %v676 = vld [vmem:[#allocation5 + $0x48] sm:$0xff]
    %v677 = vld [vmem:[#allocation5 + $0x50] sm:$0xff]
    %v678 = vld [vmem:[#allocation5 + $0x58] sm:$0xff]
    %v679 = vld [vmem:[#allocation5 + $0x60] sm:$0xff]
    %v680 = vld [vmem:[#allocation5 + $0x68] sm:$0xff]
    %v681 = vld [vmem:[#allocation5 + $0x70] sm:$0xff]
    %v682 = vld [vmem:[#allocation5 + $0x78] sm:$0xff]
    %v683 = vld [vmem:[%s5 + $0x2] sm:$0x1]
    %v684 = vlaneseq
    %v685 = vshrl.u32 %v684, 7
    %v686 = vsub.s32 0, %v685
    %v687 = vrot.slane %v683, %v686
    %688 = vmatprep.subr.mxu0 0.0
    %689 = vmatpush1.msra.mxu0 %v682
    %690 = vmatprep.subr.mxu0 0.0
    %691 = vmatpush1.msra.mxu0 %v681
    %692 = vmatprep.subr.mxu0 0.0
    %693 = vmatpush1.msra.mxu0 %v680
    %694 = vmatprep.subr.mxu0 0.0
    %695 = vmatpush1.msra.mxu0 %v679
    %696 = vmatprep.subr.mxu0 0.0
    %697 = vmatpush1.msra.mxu0 %v678
    %698 = vmatprep.subr.mxu0 0.0
    %699 = vmatpush1.msra.mxu0 %v677
    %700 = vmatprep.subr.mxu0 0.0
    %701 = vmatpush1.msra.mxu0 %v676
    %702 = vmatprep.subr.mxu0 0.0
    %703 = vmatpush1.msra.mxu0 %v675
    %704 = vmatprep.subr.mxu0 0.0
    %705 = vmatpush1.msra.mxu0 %v674
    %706 = vmatprep.subr.mxu0 0.0
    %707 = vmatpush1.msra.mxu0 %v673
    %708 = vmatprep.subr.mxu0 0.0
    %709 = vmatpush1.msra.mxu0 %v672
    %710 = vmatprep.subr.mxu0 0.0
    %711 = vmatpush1.msra.mxu0 %v671
    %712 = vmatprep.subr.mxu0 0.0
    %713 = vmatpush1.msra.mxu0 %v670
    %714 = vmatprep.subr.mxu0 0.0
    %715 = vmatpush1.msra.mxu0 %v669
    %716 = vmatprep.subr.mxu0 0.0
    %717 = vmatpush1.msra.mxu0 %v668
    %718 = vmatprep.subr.mxu0 0.0
    %719 = vmatpush1.msra.mxu0 %v667
    %720 = vmatprep.subr.mxu0 0.0
    %721 = vmatpush2.msra.mxu0 0.0
    %722 = vmatprep.subr.mxu0 0.0
    %723 = vmatpush2.msra.mxu0 0.0
    %724 = vmatprep.subr.mxu0 0.0
    %725 = vmatpush2.msra.mxu0 0.0
    %726 = vmatprep.subr.mxu0 0.0
    %727 = vmatpush2.msra.mxu0 0.0
    %728 = vmatprep.subr.mxu0 0.0
    %729 = vmatpush2.msra.mxu0 0.0
    %730 = vmatprep.subr.mxu0 0.0
    %731 = vmatpush2.msra.mxu0 0.0
    %732 = vmatprep.subr.mxu0 0.0
    %733 = vmatpush2.msra.mxu0 0.0
    %734 = vmatprep.subr.mxu0 0.0
    %735 = vmatpush2.msra.mxu0 0.0
    %736 = vmatprep.subr.mxu0 0.0
    %737 = vmatpush2.msra.mxu0 0.0
    %738 = vmatprep.subr.mxu0 0.0
    %739 = vmatpush2.msra.mxu0 0.0
    %740 = vmatprep.subr.mxu0 0.0
    %741 = vmatpush2.msra.mxu0 0.0
    %742 = vmatprep.subr.mxu0 0.0
    %743 = vmatpush2.msra.mxu0 0.0
    %744 = vmatprep.subr.mxu0 0.0
    %745 = vmatpush2.msra.mxu0 0.0
    %746 = vmatprep.subr.mxu0 0.0
    %747 = vmatpush2.msra.mxu0 0.0
    %748 = vmatprep.subr.mxu0 0.0
    %749 = vmatpush2.msra.mxu0 0.0
    %750 = vmatprep.subr.mxu0 0.0
    %751 = vmatpush2.msra.mxu0 0.0
    %752 = vmatprep.mubr.f32.mxu0 0.0
    %753 = vmatmul.mubr.f32.gmra.mxu0 %v562
    %v754 = vpop.f32.mrf.mxu0
    %v755 = vadd.f32 %v687, %v754
    %v756 = vpop.f32.mrf.mxu0
    %757 = vmatprep.mubr.f32.mxu0 0.0
    %758 = vmatmul.mubr.f32.gmra.mxu0 %v666
    %v759 = vpop.f32.mrf.mxu0
    %v760 = vadd.f32 %v687, %v759
    %v761 = vpop.f32.mrf.mxu0
    %762 = vdwg.mxu0
    %v763 = vand.u32 2147483647, %v755
    %vm764 = vcmp.le.f32.partialorder %v763, 0.7853982
    %vm765 = vcmp.lt.s32.totalorder %v755, 0
    %v766 = vand.u32 %v755, 2139095040
    %v767 = vshrl.u32 %v766, 23
    %v768 = vsub.s32 %v767, 127
    %v769 = vand.u32 2147483647, %v755
    %v770 = vand.u32 %v769, 8388607
    %v771 = vor.u32 %v770, 8388608
    %v772 = vsub.s32 0, %v771
    %v773 = vadd.s32 %v768, 1
    %vm774 = vcmp.gt.s32.totalorder %v773, 0
    %v775 = vsel %vm774, %v773, 0
    %v776 = vshrl.u32 %v775, 5
    %v777 = vand.u32 %v775, 31
    %v778 = vsub.s32 32, %v777
    %v779 = vshrl.u32 683565275, %v778
    %v780 = vshll.u32 683565275, %v777
    %v781 = vshrl.u32 2475754826, %v778
    %v782 = vor.u32 %v780, %v781
    %v783 = vshll.u32 2475754826, %v777
    %v784 = vshrl.u32 2131351028, %v778
    %v785 = vor.u32 %v783, %v784
    %v786 = vshll.u32 2131351028, %v777
    %v787 = vshrl.u32 2102212464, %v778
    %v788 = vor.u32 %v786, %v787
    %v789 = vshll.u32 2102212464, %v777
    %v790 = vshrl.u32 920167782, %v778
    %v791 = vor.u32 %v789, %v790
    %v792 = vshll.u32 920167782, %v777
    %v793 = vshrl.u32 1326507024, %v778
    %v794 = vor.u32 %v792, %v793
    %vm795 = vcmp.lt.s32.totalorder %v776, 1
    %vm796 = vcmp.lt.s32.totalorder %v776, 2
    %vm797 = vcmp.lt.s32.totalorder %v776, 3
    %vm798 = vcmp.lt.s32.totalorder %v776, 4
    %v799 = vsel %vm795, %v779, %v782
    %v800 = vsel %vm798, %v788, 2102212464
    %v801 = vsel %vm797, %v785, %v800
    %v802 = vsel %vm796, %v799, %v801
    %v803 = vsel %vm795, %v782, %v785
    %v804 = vsel %vm798, %v791, 920167782
    %v805 = vsel %vm797, %v788, %v804
    %v806 = vsel %vm796, %v803, %v805
    %v807 = vsel %vm795, %v785, %v788
    %v808 = vsel %vm798, %v794, 1326507024
    %v809 = vsel %vm797, %v791, %v808
    %v810 = vsel %vm796, %v807, %v809
    %v811 = vshll.u32 %v771, 8
    %v812 = vmul.u32.u64.compose %v811, %v810
    %v813 = vextract.low.u32 %v812
    %v814 = vextract.high.u32 %v812
    %v815 = vmul.u32.u64.compose %v811, %v806
    %v816 = vextract.low.u32 %v815
    %v817 = vextract.high.u32 %v815
    %v818 = vmul.u32 %v811, %v802
    %v819 = vadd.s32 %v814, %v816
    %vm820 = vc.u32 %v814, %v816
    %v821 = vadd.s32 %v817, 1
    %v822 = vsel %vm820, %v821, %v817
    %v823 = vadd.s32 %v818, %v822
    %v824 = vadd.s32 %v823, 536870912
    %v825 = vshrl.u32 %v824, 30
    %v826 = vshll.u32 %v825, 30
    %v827 = vsub.s32 %v823, %v826
    %vm828 = vcmp.lt.s32.totalorder %v827, 0
    %v829 = vsub.s32 0, %v827
    %v830 = vsel %vm828, %v829, %v827
    %v831 = vclz %v830
    %v832 = vsub.s32 %v831, 2
    %vm833 = vcmp.gt.s32.totalorder 0, %v832
    %v834 = vsel %vm833, 0, %v832
    %v835 = vsub.s32 32, %v834
    %v836 = vshll.u32 %v827, %v834
    %v837 = vshrl.u32 %v819, %v835
    %v838 = vor.u32 %v836, %v837
    %v839 = vsub.s32 4294967266, %v834
    %v840 = vadd.s32 %v839, 127
    %v841 = vshll.u32 %v840, 23
    %v842 = vor.u32 4788187, %v841
    %v843 = vand.u32 2147483647, %v842
    %v845 = vcvt.s32.f32 %v838
    %v846 = vmul.f32 %v845, %v843
    %v847 = vxor.u32 %v846, 2147483648
    %v848 = vsel %vm765, %v847, %v846
    %v849 = vsub.s32 4, %v825
    %v850 = vsel %vm765, %v849, %v825
    %v851 = vsel %vm764, %v755, %v848
    %v852 = vsel %vm764, 0, %v850
    %v853 = vcosq.f32.pop %v851
    %v854 = vsinq.f32.pop %v851
    %vm855 = vweird.f32 %v755
    %v856 = vadd.s32 %v852, 3
    %v857 = vand.u32 %v856, 3
    %vm858 = vcmp.lt.s32.totalorder %v857, 2
    %vm859 = vcmp.eq.s32.totalorder %v857, 0
    %v860 = vxor.u32 %v854, 2147483648
    %v861 = vsel %vm859, %v853, %v860
    %vm862 = vcmp.eq.s32.totalorder %v857, 2
    %v863 = vxor.u32 %v853, 2147483648
    %v864 = vsel %vm862, %v863, %v854
    %v865 = vsel %vm858, %v861, %v864
    %v866 = vsel %vm855, nan, %v865
    %v867 = vand.u32 2147483647, %v760
    %vm868 = vcmp.le.f32.partialorder %v867, 0.7853982
    %vm869 = vcmp.lt.s32.totalorder %v760, 0
    %v870 = vand.u32 %v760, 2139095040
    %v871 = vshrl.u32 %v870, 23
    %v872 = vsub.s32 %v871, 127
    %v873 = vand.u32 2147483647, %v760
    %v874 = vand.u32 %v873, 8388607
    %v875 = vor.u32 %v874, 8388608
    %v876 = vsub.s32 0, %v875
    %v877 = vadd.s32 %v872, 1
    %vm878 = vcmp.gt.s32.totalorder %v877, 0
    %v879 = vsel %vm878, %v877, 0
    %v880 = vshrl.u32 %v879, 5
    %v881 = vand.u32 %v879, 31
    %v882 = vsub.s32 32, %v881
    %v883 = vshrl.u32 683565275, %v882
    %v884 = vshll.u32 683565275, %v881
    %v885 = vshrl.u32 2475754826, %v882
    %v886 = vor.u32 %v884, %v885
    %v887 = vshll.u32 2475754826, %v881
    %v888 = vshrl.u32 2131351028, %v882
    %v889 = vor.u32 %v887, %v888
    %v890 = vshll.u32 2131351028, %v881
    %v891 = vshrl.u32 2102212464, %v882
    %v892 = vor.u32 %v890, %v891
    %v893 = vshll.u32 2102212464, %v881
    %v894 = vshrl.u32 920167782, %v882
    %v895 = vor.u32 %v893, %v894
    %v896 = vshll.u32 920167782, %v881
    %v897 = vshrl.u32 1326507024, %v882
    %v898 = vor.u32 %v896, %v897
    %vm899 = vcmp.lt.s32.totalorder %v880, 1
    %vm900 = vcmp.lt.s32.totalorder %v880, 2
    %vm901 = vcmp.lt.s32.totalorder %v880, 3
    %vm902 = vcmp.lt.s32.totalorder %v880, 4
    %v903 = vsel %vm899, %v883, %v886
    %v904 = vsel %vm902, %v892, 2102212464
    %v905 = vsel %vm901, %v889, %v904
    %v906 = vsel %vm900, %v903, %v905
    %v907 = vsel %vm899, %v886, %v889
    %v908 = vsel %vm902, %v895, 920167782
    %v909 = vsel %vm901, %v892, %v908
    %v910 = vsel %vm900, %v907, %v909
    %v911 = vsel %vm899, %v889, %v892
    %v912 = vsel %vm902, %v898, 1326507024
    %v913 = vsel %vm901, %v895, %v912
    %v914 = vsel %vm900, %v911, %v913
    %v915 = vshll.u32 %v875, 8
    %v916 = vmul.u32.u64.compose %v915, %v914
    %v917 = vextract.low.u32 %v916
    %v918 = vextract.high.u32 %v916
    %v919 = vmul.u32.u64.compose %v915, %v910
    %v920 = vextract.low.u32 %v919
    %v921 = vextract.high.u32 %v919
    %v922 = vmul.u32 %v915, %v906
    %v923 = vadd.s32 %v918, %v920
    %vm924 = vc.u32 %v918, %v920
    %v925 = vadd.s32 %v921, 1
    %v926 = vsel %vm924, %v925, %v921
    %v927 = vadd.s32 %v922, %v926
    %v928 = vadd.s32 %v927, 536870912
    %v929 = vshrl.u32 %v928, 30
    %v930 = vshll.u32 %v929, 30
    %v931 = vsub.s32 %v927, %v930
    %vm932 = vcmp.lt.s32.totalorder %v931, 0
    %v933 = vsub.s32 0, %v931
    %v934 = vsel %vm932, %v933, %v931
    %v935 = vclz %v934
    %v936 = vsub.s32 %v935, 2
    %vm937 = vcmp.gt.s32.totalorder 0, %v936
    %v938 = vsel %vm937, 0, %v936
    %v939 = vsub.s32 32, %v938
    %v940 = vshll.u32 %v931, %v938
    %v941 = vshrl.u32 %v923, %v939
    %v942 = vor.u32 %v940, %v941
    %v943 = vsub.s32 4294967266, %v938
    %v944 = vadd.s32 %v943, 127
    %v945 = vshll.u32 %v944, 23
    %v946 = vor.u32 4788187, %v945
    %v947 = vand.u32 2147483647, %v946
    %v949 = vcvt.s32.f32 %v942
    %v950 = vmul.f32 %v949, %v947
    %v951 = vxor.u32 %v950, 2147483648
    %v952 = vsel %vm869, %v951, %v950
    %v953 = vsub.s32 4, %v929
    %v954 = vsel %vm869, %v953, %v929
    %v955 = vsel %vm868, %v760, %v952
    %v956 = vsel %vm868, 0, %v954
    %v957 = vcosq.f32.pop %v955
    %v958 = vsinq.f32.pop %v955
    %vm959 = vweird.f32 %v760
    %v960 = vadd.s32 %v956, 3
    %v961 = vand.u32 %v960, 3
    %vm962 = vcmp.lt.s32.totalorder %v961, 2
    %vm963 = vcmp.eq.s32.totalorder %v961, 0
    %v964 = vxor.u32 %v958, 2147483648
    %v965 = vsel %vm963, %v957, %v964
    %vm966 = vcmp.eq.s32.totalorder %v961, 2
    %v967 = vxor.u32 %v957, 2147483648
    %v968 = vsel %vm966, %v967, %v958
    %v969 = vsel %vm962, %v965, %v968
    %v970 = vsel %vm959, nan, %v969
    %v971 = vld [vmem:[#allocation7] sm:$0xff]
    %v972 = vld [vmem:[#allocation7 + $0x8] sm:$0xff]
    %v973 = vld [vmem:[#allocation7 + $0x10] sm:$0xff]
    %v974 = vld [vmem:[#allocation7 + $0x18] sm:$0xff]
    %v975 = vld [vmem:[#allocation7 + $0x20] sm:$0xff]
    %v976 = vld [vmem:[#allocation7 + $0x28] sm:$0xff]
    %v977 = vld [vmem:[#allocation7 + $0x30] sm:$0xff]
    %v978 = vld [vmem:[#allocation7 + $0x38] sm:$0xff]
    %v979 = vld [vmem:[#allocation7 + $0x40] sm:$0xff]
    %v980 = vld [vmem:[#allocation7 + $0x48] sm:$0xff]
    %v981 = vld [vmem:[#allocation7 + $0x50] sm:$0xff]
    %v982 = vld [vmem:[#allocation7 + $0x58] sm:$0xff]
    %v983 = vld [vmem:[#allocation7 + $0x60] sm:$0xff]
    %v984 = vld [vmem:[#allocation7 + $0x68] sm:$0xff]
    %v985 = vld [vmem:[#allocation7 + $0x70] sm:$0xff]
    %v986 = vld [vmem:[#allocation7 + $0x78] sm:$0xff]
    %v987 = vld [vmem:[%s5 + $0x3] sm:$0x1]
    %v988 = vlaneseq
    %v989 = vshrl.u32 %v988, 7
    %v990 = vsub.s32 0, %v989
    %v991 = vrot.slane %v987, %v990
    %992 = vmatprep.subr.mxu0 0.0
    %993 = vmatpush1.msra.mxu0 %v986
    %994 = vmatprep.subr.mxu0 0.0
    %995 = vmatpush1.msra.mxu0 %v985
    %996 = vmatprep.subr.mxu0 0.0
    %997 = vmatpush1.msra.mxu0 %v984
    %998 = vmatprep.subr.mxu0 0.0
    %999 = vmatpush1.msra.mxu0 %v983
    %1000 = vmatprep.subr.mxu0 0.0
    %1001 = vmatpush1.msra.mxu0 %v982
    %1002 = vmatprep.subr.mxu0 0.0
    %1003 = vmatpush1.msra.mxu0 %v981
    %1004 = vmatprep.subr.mxu0 0.0
    %1005 = vmatpush1.msra.mxu0 %v980
    %1006 = vmatprep.subr.mxu0 0.0
    %1007 = vmatpush1.msra.mxu0 %v979
    %1008 = vmatprep.subr.mxu0 0.0
    %1009 = vmatpush1.msra.mxu0 %v978
    %1010 = vmatprep.subr.mxu0 0.0
    %1011 = vmatpush1.msra.mxu0 %v977
    %1012 = vmatprep.subr.mxu0 0.0
    %1013 = vmatpush1.msra.mxu0 %v976
    %1014 = vmatprep.subr.mxu0 0.0
    %1015 = vmatpush1.msra.mxu0 %v975
    %1016 = vmatprep.subr.mxu0 0.0
    %1017 = vmatpush1.msra.mxu0 %v974
    %1018 = vmatprep.subr.mxu0 0.0
    %1019 = vmatpush1.msra.mxu0 %v973
    %1020 = vmatprep.subr.mxu0 0.0
    %1021 = vmatpush1.msra.mxu0 %v972
    %1022 = vmatprep.subr.mxu0 0.0
    %1023 = vmatpush1.msra.mxu0 %v971
    %1024 = vmatprep.subr.mxu0 0.0
    %1025 = vmatpush2.msra.mxu0 0.0
    %1026 = vmatprep.subr.mxu0 0.0
    %1027 = vmatpush2.msra.mxu0 0.0
    %1028 = vmatprep.subr.mxu0 0.0
    %1029 = vmatpush2.msra.mxu0 0.0
    %1030 = vmatprep.subr.mxu0 0.0
    %1031 = vmatpush2.msra.mxu0 0.0
    %1032 = vmatprep.subr.mxu0 0.0
    %1033 = vmatpush2.msra.mxu0 0.0
    %1034 = vmatprep.subr.mxu0 0.0
    %1035 = vmatpush2.msra.mxu0 0.0
    %1036 = vmatprep.subr.mxu0 0.0
    %1037 = vmatpush2.msra.mxu0 0.0
    %1038 = vmatprep.subr.mxu0 0.0
    %1039 = vmatpush2.msra.mxu0 0.0
    %1040 = vmatprep.subr.mxu0 0.0
    %1041 = vmatpush2.msra.mxu0 0.0
    %1042 = vmatprep.subr.mxu0 0.0
    %1043 = vmatpush2.msra.mxu0 0.0
    %1044 = vmatprep.subr.mxu0 0.0
    %1045 = vmatpush2.msra.mxu0 0.0
    %1046 = vmatprep.subr.mxu0 0.0
    %1047 = vmatpush2.msra.mxu0 0.0
    %1048 = vmatprep.subr.mxu0 0.0
    %1049 = vmatpush2.msra.mxu0 0.0
    %1050 = vmatprep.subr.mxu0 0.0
    %1051 = vmatpush2.msra.mxu0 0.0
    %1052 = vmatprep.subr.mxu0 0.0
    %1053 = vmatpush2.msra.mxu0 0.0
    %1054 = vmatprep.subr.mxu0 0.0
    %1055 = vmatpush2.msra.mxu0 0.0
    %1056 = vmatprep.mubr.f32.mxu0 0.0
    %1057 = vmatmul.mubr.f32.gmra.mxu0 %v866
    %v1058 = vpop.f32.mrf.mxu0
    %v1059 = vadd.f32 %v991, %v1058
    %v1060 = vpop.f32.mrf.mxu0
    %1061 = vmatprep.mubr.f32.mxu0 0.0
    %1062 = vmatmul.mubr.f32.gmra.mxu0 %v970
    %v1063 = vpop.f32.mrf.mxu0
    %v1064 = vadd.f32 %v991, %v1063
    %v1065 = vpop.f32.mrf.mxu0
    %1066 = vdwg.mxu0
    %1067 = vst [vmem:[#allocation8] sm:$0xff] %v1059
    %1068 = vst [vmem:[#allocation8 + $0x8] sm:$0xff] %v1064
    // Predicated region
    $region38: #{tpu_custom_call.1} parent=1 // pred_check
      _
    $region39: #{tpu_custom_call.1} parent=1 // pred_check_branch
      %1070 = sbr.rel (0) target = $region41
    $region40: #{tpu_custom_call.1} parent=1 // pred_region
      %s1072 = ssub.s32 256, 256
      %1073 = vsyncadd [#allocation4], %s1072
      %s1074 = sshll.u32 [#allocation8], 4
      %s1075 = int_to_ptr.vmem [resolvable:$true] %s1074
      %1080 = dma.vmem_to_hbm [thread:$0]  %s1075, 256, %s6, [#allocation4], 128, 128, 8
    $region41: #{tpu_custom_call.1} parent=1 // pred_fallthru
      _
    // Predicated region
    $region42: #{tpu_custom_call.1} parent=1 // pred_check
      _
    $region43: #{tpu_custom_call.1} parent=1 // pred_check_branch
      %1082 = sbr.rel (0) target = $region45
    $region44: #{tpu_custom_call.1} parent=1 // pred_region
      %1083 = dma.done [#allocation4], 256
    $region45: #{tpu_custom_call.1} parent=1 // pred_fallthru
      _
    %1084 = vsyncpa [#allocation3], 1
    %1085 = vsyncpa [#allocation6], 1
    %1086 = vsyncpa [#allocation4], 1

</llo_original>
